<compile_context>
chip_gen: v5e
topology: v5e:2x2
jax: 0.10.0
libtpu: 0.0.40
codegen_flags: <defaults>
</compile_context>

<pallas_src>
import jax
import jax.numpy as jnp
from jax.experimental import pallas as pl
from jax.experimental.pallas import tpu as pltpu

_IN = 784        # flattened 1*28*28
_OUT = 10        # logical output width
_LANE = 128      # lane-padded output width (full-width stores)
_TB_MAX = 512    # max batch rows per grid step


def _round_up(n, m):
    return ((n + m - 1) // m) * m


def _linreg_kernel(x_ref, w_ref, b_ref, o_ref):
    # MXU matmul (f32 accumulate), bias add on VPU, exp on EUP — all in VMEM.
    y = jnp.dot(x_ref[...], w_ref[...], preferred_element_type=jnp.float32)
    y = y + b_ref[...]                       # (TB, 128) + (1, 128) broadcast
    o_ref[...] = jnp.exp(y).astype(o_ref.dtype)


def linreg_forward(x, w, b):
    """x: (B, 1, 28, 28) f32, w: (784, 10) f32, b: (10,) f32 -> (B, 10) f32.

    Computes exp(flatten(x, 1) @ w + b), matching the PyTorch module
    (w is stored transposed relative to nn.Linear's (out, in) weight).
    """
    B = x.shape[0]
    x_flat = x.reshape(B, -1).astype(jnp.float32)   # torch.flatten(x, 1)
    assert x_flat.shape[1] == _IN

    # Lane-pad weight / bias to width 128 (zeros in the padded columns).
    w_p = jnp.zeros((_IN, _LANE), jnp.float32).at[:, :_OUT].set(
        w.astype(jnp.float32))
    b_p = jnp.zeros((1, _LANE), jnp.float32).at[:, :_OUT].set(
        b.reshape(1, _OUT).astype(jnp.float32))

    # Batch tiling: TB rows per grid step, batch padded to a multiple of TB.
    tb = min(_TB_MAX, _round_up(B, 8))
    Bp = _round_up(B, tb)
    if Bp != B:
        x_flat = jnp.pad(x_flat, ((0, Bp - B), (0, 0)))

    out_padded = pl.pallas_call(
        _linreg_kernel,
        out_shape=jax.ShapeDtypeStruct((Bp, _LANE), jnp.float32),
        grid_spec=pltpu.PrefetchScalarGridSpec(
            num_scalar_prefetch=0,
            grid=(Bp // tb,),
            in_specs=[
                pl.BlockSpec((tb, _IN), lambda i: (i, 0)),     # x: tiled over batch
                pl.BlockSpec((_IN, _LANE), lambda i: (0, 0)),  # w: VMEM-resident
                pl.BlockSpec((1, _LANE), lambda i: (0, 0)),    # b: VMEM-resident
            ],
            out_specs=pl.BlockSpec((tb, _LANE), lambda i: (i, 0)),
        ),
        compiler_params=pltpu.CompilerParams(
            dimension_semantics=("parallel",),   # shard batch steps across TCs (v7x)
        ),
    )(x_flat, w_p, b_p)

    return out_padded[:B, :_OUT]


if __name__ == "__main__":
    key = jax.random.PRNGKey(0)
    kx, kw, kb = jax.random.split(key, 3)

    # Small MNIST-like batch; B=10 deliberately not a multiple of 8 to
    # exercise the batch-padding path.
    B = 10
    x = jax.random.normal(kx, (B, 1, 28, 28), dtype=jnp.float32)

    # Deterministic Linear(784, 10) init, U(-1/sqrt(in), 1/sqrt(in)).
    bound = 1.0 / jnp.sqrt(784.0)
    w = jax.random.uniform(kw, (_IN, _OUT), minval=-bound, maxval=bound,
                           dtype=jnp.float32)   # stored as (in, out)
    b = jax.random.uniform(kb, (_OUT,), minval=-bound, maxval=bound,
                           dtype=jnp.float32)

    out = linreg_forward(x, w, b)
    out = jax.block_until_ready(out)

    # Pure-JAX reference check of the forward semantics.
    ref = jnp.exp(x.reshape(B, -1) @ w + b)
    assert out.shape == (B, _OUT)
    assert jnp.allclose(out, ref, rtol=1e-5, atol=1e-5)

    print("KERNEL_OK")
</pallas_src>

<mosaic_0001>
module attributes {stable_mosaic.version = 11 : i64} {
  func.func @_linreg_kernel(%arg0: i32, %arg1: memref<16x784xf32, #tpu.memory_space<vmem>>, %arg2: memref<784x128xf32, #tpu.memory_space<vmem>>, %arg3: memref<1x128xf32, #tpu.memory_space<vmem>>, %arg4: memref<16x128xf32, #tpu.memory_space<vmem>>) attributes {dimension_semantics = [#tpu.dimension_semantics<parallel>], iteration_bounds = array<i64: 1>, scalar_prefetch = 0 : i64, scratch_operands = 0 : i64, tpu.core_type = #tpu.core_type<tc>, window_params = [{transform_indices = @transform_0, window_bounds = array<i64: 16, 784>}, {pipeline_mode = #tpu.pipeline_mode<synchronous>, transform_indices = @transform_1, window_bounds = array<i64: 784, 128>}, {pipeline_mode = #tpu.pipeline_mode<synchronous>, transform_indices = @transform_2, window_bounds = array<i64: 1, 128>}, {transform_indices = @transform_3, window_bounds = array<i64: 16, 128>}]} {
    %c0 = arith.constant 0 : index
    %c0_0 = arith.constant 0 : index
    %0 = vector.load %arg1[%c0, %c0_0] : memref<16x784xf32, #tpu.memory_space<vmem>>, vector<16x784xf32>
    %c0_1 = arith.constant 0 : index
    %c0_2 = arith.constant 0 : index
    %1 = vector.load %arg2[%c0_1, %c0_2] : memref<784x128xf32, #tpu.memory_space<vmem>>, vector<784x128xf32>
    %cst = arith.constant dense<0.000000e+00> : vector<16x128xf32>
    %2 = tpu.matmul %0, %1, %cst {dimension_numbers = #tpu.dot_dimension_numbers<[1], [0], [0], [1], [0, 0, 1, 1], [], []>} : vector<16x784xf32>, vector<784x128xf32>, vector<16x128xf32> -> vector<16x128xf32>
    %c0_3 = arith.constant 0 : index
    %c0_4 = arith.constant 0 : index
    %3 = vector.load %arg3[%c0_3, %c0_4] : memref<1x128xf32, #tpu.memory_space<vmem>>, vector<1x128xf32>
    %4 = vector.broadcast %3 : vector<1x128xf32> to vector<16x128xf32>
    %5 = arith.addf %2, %4 : vector<16x128xf32>
    %6 = math.exp %5 : vector<16x128xf32>
    %c0_5 = arith.constant 0 : index
    %c0_6 = arith.constant 0 : index
    %7 = vector.load %arg4[%c0_5, %c0_6] : memref<16x128xf32, #tpu.memory_space<vmem>>, vector<16x128xf32>
    tpu.vector_store %arg4[%c0_5, %c0_6], %6 {strides = array<i32>} : memref<16x128xf32, #tpu.memory_space<vmem>>, vector<16x128xf32>,
    return
  }
  func.func @transform_0(%arg0: i32) -> (i32, i32) {
    %c0_i32 = arith.constant 0 : i32
    %c0_i32_0 = arith.constant 0 : i32
    return %arg0, %c0_i32 : i32, i32
  }
  func.func @transform_1(%arg0: i32) -> (i32, i32) {
    %c0_i32 = arith.constant 0 : i32
    %c0_i32_0 = arith.constant 0 : i32
    %c0_i32_1 = arith.constant 0 : i32
    return %c0_i32, %c0_i32_0 : i32, i32
  }
  func.func @transform_2(%arg0: i32) -> (i32, i32) {
    %c0_i32 = arith.constant 0 : i32
    %c0_i32_0 = arith.constant 0 : i32
    %c0_i32_1 = arith.constant 0 : i32
    return %c0_i32, %c0_i32_0 : i32, i32
  }
  func.func @transform_3(%arg0: i32) -> (i32, i32) {
    %c0_i32 = arith.constant 0 : i32
    %c0_i32_0 = arith.constant 0 : i32
    return %arg0, %c0_i32 : i32, i32
  }
}

</mosaic_0001>

<llo_original>
// kernel: tpu_custom_call.1
$region0: #{tpu_custom_call.1}
  #allocation0 [shape = 'u32[]', space=smem, size = 0x4, offset = 0x4, fixed_abs, tag = 'smem constant byte address 0x4 - core index']
  #allocation1 [shape = 'u32[72,128]{1,0:T(1,128)}', space=vmem, size = 0x9000, scoped, tag = 'internal scratch']
  %s0 = inlined_call_operand.hbm [shape: f32[16,784], index: 0, kind: input, shape index: {}]
  %s1 = inlined_call_operand.hbm [shape: f32[784,128], index: 1, kind: input, shape index: {}]
  %s2 = inlined_call_operand.vmem [shape: f32[1,128], index: 2, kind: input, shape index: {}]
  %s3 = inlined_call_operand.hbm [shape: f32[16,128], index: 3, kind: output, shape index: {}]
  %s4 = sld [smem:[#allocation0]]
  $region30: #{tpu_custom_call.1} parent=0
    _
  %s6 = ssub.s32 1, %s4
  %s7 = scalar_select 0, %s6, %s4
  $region1: #{tpu_custom_call.1} parent=0
    #allocation2 [shape = 'u8[57344]{0}', space=vmem, size = 0xe000, scoped, tag = 'input window, operand 0, single buffered']
    #allocation3 [shape = 's32[1]{0}', space=sflag, size = 0x4, scoped, tag = 'scoped memory for tpu_custom_call.1']
    #allocation4 [shape = 's32[1]{0}', space=sflag, size = 0x4, scoped, tag = 'scoped memory for tpu_custom_call.1']
    #allocation5 [shape = 'u8[401408]{0}', space=vmem, size = 0x62000, scoped, tag = 'input window, operand 1, single buffered']
    #allocation6 [shape = 's32[1]{0}', space=sflag, size = 0x4, scoped, tag = 'scoped memory for tpu_custom_call.1']
    #allocation7 [shape = 'u8[8192]{0}', space=vmem, size = 0x2000, scoped, tag = 'output window, operand 0, single buffered']
    %8 = vsyncpa [#allocation3], 0
    %9 = vsyncpa [#allocation6], 0
    %10 = vsyncpa [#allocation4], 0
    // Predicated region
    $region2: #{tpu_custom_call.1} parent=1 // pred_check
      _
    $region3: #{tpu_custom_call.1} parent=1 // pred_check_branch
      %12 = sbr.rel (0) target = $region5
    $region4: #{tpu_custom_call.1} parent=1 // pred_region
      %14 = vsyncadd [#allocation3], 0
      %s15 = sshll.u32 %s0, 4
      %s16 = int_to_ptr.hbm [resolvable:$true] %s15
      %s17 = sshll.u32 [#allocation2], 4
      %s18 = int_to_ptr.vmem [resolvable:$true] %s17
      %23 = dma.hbm_to_vmem [thread:$0]  %s16, 1792, %s18, [#allocation3], 896, 896, 56
    $region5: #{tpu_custom_call.1} parent=1 // pred_fallthru
      _
    // Predicated region
    $region6: #{tpu_custom_call.1} parent=1 // pred_check
      _
    $region7: #{tpu_custom_call.1} parent=1 // pred_check_branch
      %25 = sbr.rel (0) target = $region9
    $region8: #{tpu_custom_call.1} parent=1 // pred_region
      %27 = vsyncadd [#allocation6], 0
      %s28 = sshll.u32 %s1, 4
      %s29 = int_to_ptr.hbm [resolvable:$true] %s28
      %s30 = sshll.u32 [#allocation5], 4
      %s31 = int_to_ptr.vmem [resolvable:$true] %s30
      %36 = dma.hbm_to_vmem [thread:$0]  %s29, 12544, %s31, [#allocation6], 128, 128, 8
    $region9: #{tpu_custom_call.1} parent=1 // pred_fallthru
      _
    // Predicated region
    $region10: #{tpu_custom_call.1} parent=1 // pred_check
      _
    $region11: #{tpu_custom_call.1} parent=1 // pred_check_branch
      %38 = sbr.rel (0) target = $region13
    $region12: #{tpu_custom_call.1} parent=1 // pred_region
      _
    $region13: #{tpu_custom_call.1} parent=1 // pred_fallthru
      _
    // Predicated region
    $region14: #{tpu_custom_call.1} parent=1 // pred_check
      _
    $region15: #{tpu_custom_call.1} parent=1 // pred_check_branch
      %40 = sbr.rel (0) target = $region17
    $region16: #{tpu_custom_call.1} parent=1 // pred_region
      %42 = dma.done [#allocation3], 1792
    $region17: #{tpu_custom_call.1} parent=1 // pred_fallthru
      _
    // Predicated region
    $region18: #{tpu_custom_call.1} parent=1 // pred_check
      _
    $region19: #{tpu_custom_call.1} parent=1 // pred_check_branch
      %44 = sbr.rel (0) target = $region21
    $region20: #{tpu_custom_call.1} parent=1 // pred_region
      %46 = dma.done [#allocation6], 12544
    $region21: #{tpu_custom_call.1} parent=1 // pred_fallthru
      _
    %v47 = vld [vmem:[#allocation2] sm:$0xff]
    %v48 = vld [vmem:[#allocation2 + $0x8] sm:$0xff]
    %v49 = vld [vmem:[#allocation2 + $0x10] sm:$0xff]
    %v50 = vld [vmem:[#allocation2 + $0x18] sm:$0xff]
    %v51 = vld [vmem:[#allocation2 + $0x20] sm:$0xff]
    %v52 = vld [vmem:[#allocation2 + $0x28] sm:$0xff]
    %v53 = vld [vmem:[#allocation2 + $0x30] sm:$0xff]
    %v54 = vld [vmem:[#allocation2 + $0x38] sm:$0xff]
    %v55 = vld [vmem:[#allocation2 + $0x40] sm:$0xff]
    %v56 = vld [vmem:[#allocation2 + $0x48] sm:$0xff]
    %v57 = vld [vmem:[#allocation2 + $0x50] sm:$0xff]
    %v58 = vld [vmem:[#allocation2 + $0x58] sm:$0xff]
    %v59 = vld [vmem:[#allocation2 + $0x60] sm:$0xff]
    %v60 = vld [vmem:[#allocation2 + $0x68] sm:$0xff]
    %v61 = vld [vmem:[#allocation5] sm:$0xff]
    %v62 = vld [vmem:[#allocation5 + $0x8] sm:$0xff]
    %v63 = vld [vmem:[#allocation5 + $0x10] sm:$0xff]
    %v64 = vld [vmem:[#allocation5 + $0x18] sm:$0xff]
    %v65 = vld [vmem:[#allocation5 + $0x20] sm:$0xff]
    %v66 = vld [vmem:[#allocation5 + $0x28] sm:$0xff]
    %v67 = vld [vmem:[#allocation5 + $0x30] sm:$0xff]
    %v68 = vld [vmem:[#allocation5 + $0x38] sm:$0xff]
    %v69 = vld [vmem:[#allocation5 + $0x40] sm:$0xff]
    %v70 = vld [vmem:[#allocation5 + $0x48] sm:$0xff]
    %v71 = vld [vmem:[#allocation5 + $0x50] sm:$0xff]
    %v72 = vld [vmem:[#allocation5 + $0x58] sm:$0xff]
    %v73 = vld [vmem:[#allocation5 + $0x60] sm:$0xff]
    %v74 = vld [vmem:[#allocation5 + $0x68] sm:$0xff]
    %v75 = vld [vmem:[#allocation5 + $0x70] sm:$0xff]
    %v76 = vld [vmem:[#allocation5 + $0x78] sm:$0xff]
    %v77 = vld [vmem:[#allocation5 + $0x80] sm:$0xff]
    %v78 = vld [vmem:[#allocation5 + $0x88] sm:$0xff]
    %v79 = vld [vmem:[#allocation5 + $0x90] sm:$0xff]
    %v80 = vld [vmem:[#allocation5 + $0x98] sm:$0xff]
    %v81 = vld [vmem:[#allocation5 + $0xa0] sm:$0xff]
    %v82 = vld [vmem:[#allocation5 + $0xa8] sm:$0xff]
    %v83 = vld [vmem:[#allocation5 + $0xb0] sm:$0xff]
    %v84 = vld [vmem:[#allocation5 + $0xb8] sm:$0xff]
    %v85 = vld [vmem:[#allocation5 + $0xc0] sm:$0xff]
    %v86 = vld [vmem:[#allocation5 + $0xc8] sm:$0xff]
    %v87 = vld [vmem:[#allocation5 + $0xd0] sm:$0xff]
    %v88 = vld [vmem:[#allocation5 + $0xd8] sm:$0xff]
    %v89 = vld [vmem:[#allocation5 + $0xe0] sm:$0xff]
    %v90 = vld [vmem:[#allocation5 + $0xe8] sm:$0xff]
    %v91 = vld [vmem:[#allocation5 + $0xf0] sm:$0xff]
    %v92 = vld [vmem:[#allocation5 + $0xf8] sm:$0xff]
    %v93 = vld [vmem:[#allocation5 + $0x100] sm:$0xff]
    %v94 = vld [vmem:[#allocation5 + $0x108] sm:$0xff]
    %v95 = vld [vmem:[#allocation5 + $0x110] sm:$0xff]
    %v96 = vld [vmem:[#allocation5 + $0x118] sm:$0xff]
    %v97 = vld [vmem:[#allocation5 + $0x120] sm:$0xff]
    %v98 = vld [vmem:[#allocation5 + $0x128] sm:$0xff]
    %v99 = vld [vmem:[#allocation5 + $0x130] sm:$0xff]
    %v100 = vld [vmem:[#allocation5 + $0x138] sm:$0xff]
    %v101 = vld [vmem:[#allocation5 + $0x140] sm:$0xff]
    %v102 = vld [vmem:[#allocation5 + $0x148] sm:$0xff]
    %v103 = vld [vmem:[#allocation5 + $0x150] sm:$0xff]
    %v104 = vld [vmem:[#allocation5 + $0x158] sm:$0xff]
    %v105 = vld [vmem:[#allocation5 + $0x160] sm:$0xff]
    %v106 = vld [vmem:[#allocation5 + $0x168] sm:$0xff]
    %v107 = vld [vmem:[#allocation5 + $0x170] sm:$0xff]
    %v108 = vld [vmem:[#allocation5 + $0x178] sm:$0xff]
    %v109 = vld [vmem:[#allocation5 + $0x180] sm:$0xff]
    %v110 = vld [vmem:[#allocation5 + $0x188] sm:$0xff]
    %v111 = vld [vmem:[#allocation5 + $0x190] sm:$0xff]
    %v112 = vld [vmem:[#allocation5 + $0x198] sm:$0xff]
    %v113 = vld [vmem:[#allocation5 + $0x1a0] sm:$0xff]
    %v114 = vld [vmem:[#allocation5 + $0x1a8] sm:$0xff]
    %v115 = vld [vmem:[#allocation5 + $0x1b0] sm:$0xff]
    %v116 = vld [vmem:[#allocation5 + $0x1b8] sm:$0xff]
    %v117 = vld [vmem:[#allocation5 + $0x1c0] sm:$0xff]
    %v118 = vld [vmem:[#allocation5 + $0x1c8] sm:$0xff]
    %v119 = vld [vmem:[#allocation5 + $0x1d0] sm:$0xff]
    %v120 = vld [vmem:[#allocation5 + $0x1d8] sm:$0xff]
    %v121 = vld [vmem:[#allocation5 + $0x1e0] sm:$0xff]
    %v122 = vld [vmem:[#allocation5 + $0x1e8] sm:$0xff]
    %v123 = vld [vmem:[#allocation5 + $0x1f0] sm:$0xff]
    %v124 = vld [vmem:[#allocation5 + $0x1f8] sm:$0xff]
    %v125 = vld [vmem:[#allocation5 + $0x200] sm:$0xff]
    %v126 = vld [vmem:[#allocation5 + $0x208] sm:$0xff]
    %v127 = vld [vmem:[#allocation5 + $0x210] sm:$0xff]
    %v128 = vld [vmem:[#allocation5 + $0x218] sm:$0xff]
    %v129 = vld [vmem:[#allocation5 + $0x220] sm:$0xff]
    %v130 = vld [vmem:[#allocation5 + $0x228] sm:$0xff]
    %v131 = vld [vmem:[#allocation5 + $0x230] sm:$0xff]
    %v132 = vld [vmem:[#allocation5 + $0x238] sm:$0xff]
    %v133 = vld [vmem:[#allocation5 + $0x240] sm:$0xff]
    %v134 = vld [vmem:[#allocation5 + $0x248] sm:$0xff]
    %v135 = vld [vmem:[#allocation5 + $0x250] sm:$0xff]
    %v136 = vld [vmem:[#allocation5 + $0x258] sm:$0xff]
    %v137 = vld [vmem:[#allocation5 + $0x260] sm:$0xff]
    %v138 = vld [vmem:[#allocation5 + $0x268] sm:$0xff]
    %v139 = vld [vmem:[#allocation5 + $0x270] sm:$0xff]
    %v140 = vld [vmem:[#allocation5 + $0x278] sm:$0xff]
    %v141 = vld [vmem:[#allocation5 + $0x280] sm:$0xff]
    %v142 = vld [vmem:[#allocation5 + $0x288] sm:$0xff]
    %v143 = vld [vmem:[#allocation5 + $0x290] sm:$0xff]
    %v144 = vld [vmem:[#allocation5 + $0x298] sm:$0xff]
    %v145 = vld [vmem:[#allocation5 + $0x2a0] sm:$0xff]
    %v146 = vld [vmem:[#allocation5 + $0x2a8] sm:$0xff]
    %v147 = vld [vmem:[#allocation5 + $0x2b0] sm:$0xff]
    %v148 = vld [vmem:[#allocation5 + $0x2b8] sm:$0xff]
    %v149 = vld [vmem:[#allocation5 + $0x2c0] sm:$0xff]
    %v150 = vld [vmem:[#allocation5 + $0x2c8] sm:$0xff]
    %v151 = vld [vmem:[#allocation5 + $0x2d0] sm:$0xff]
    %v152 = vld [vmem:[#allocation5 + $0x2d8] sm:$0xff]
    %v153 = vld [vmem:[#allocation5 + $0x2e0] sm:$0xff]
    %v154 = vld [vmem:[#allocation5 + $0x2e8] sm:$0xff]
    %v155 = vld [vmem:[#allocation5 + $0x2f0] sm:$0xff]
    %v156 = vld [vmem:[#allocation5 + $0x2f8] sm:$0xff]
    %v157 = vld [vmem:[#allocation5 + $0x300] sm:$0xff]
    %v158 = vld [vmem:[#allocation5 + $0x308] sm:$0xff]
    %v159 = vld [vmem:[%s2] sm:$0x1]
    %v161 = vperm.slane %v159, 0
    %vm163 = vcmask 130048
    %v165 = vsel %vm163, %v53, 0
    %v168 = vsel %vm163, %v60, 0
    %170 = vmatpush.msra.mxu0 %v76
    %171 = vmatpush.msra.mxu0 %v75
    %172 = vmatpush.msra.mxu0 %v74
    %173 = vmatpush.msra.mxu0 %v73
    %174 = vmatpush.msra.mxu0 %v72
    %175 = vmatpush.msra.mxu0 %v71
    %176 = vmatpush.msra.mxu0 %v70
    %177 = vmatpush.msra.mxu0 %v69
    %178 = vmatpush.msra.mxu0 %v68
    %179 = vmatpush.msra.mxu0 %v67
    %180 = vmatpush.msra.mxu0 %v66
    %181 = vmatpush.msra.mxu0 %v65
    %182 = vmatpush.msra.mxu0 %v64
    %183 = vmatpush.msra.mxu0 %v63
    %184 = vmatpush.msra.mxu0 %v62
    %185 = vmatpush.msra.mxu0 %v61
    %186 = vmatmul.f32.gmra.mxu0 %v47
    %v187 = vpop.f32.mrf.mxu0
    %v188 = vadd.f32 %v161, %v187
    %189 = vmatmul.f32.gmra.mxu0 %v54
    %v190 = vpop.f32.mrf.mxu0
    %v191 = vadd.f32 %v161, %v190
    %192 = vdwg.mxu0
    %193 = vmatpush.msra.mxu0 %v92
    %194 = vmatpush.msra.mxu0 %v91
    %195 = vmatpush.msra.mxu0 %v90
    %196 = vmatpush.msra.mxu0 %v89
    %197 = vmatpush.msra.mxu0 %v88
    %198 = vmatpush.msra.mxu0 %v87
    %199 = vmatpush.msra.mxu0 %v86
    %200 = vmatpush.msra.mxu0 %v85
    %201 = vmatpush.msra.mxu0 %v84
    %202 = vmatpush.msra.mxu0 %v83
    %203 = vmatpush.msra.mxu0 %v82
    %204 = vmatpush.msra.mxu0 %v81
    %205 = vmatpush.msra.mxu0 %v80
    %206 = vmatpush.msra.mxu0 %v79
    %207 = vmatpush.msra.mxu0 %v78
    %208 = vmatpush.msra.mxu0 %v77
    %209 = vmatmul.f32.gmra.mxu0 %v48
    %v210 = vpop.f32.mrf.mxu0
    %v211 = vadd.f32 %v188, %v210
    %212 = vmatmul.f32.gmra.mxu0 %v55
    %v213 = vpop.f32.mrf.mxu0
    %v214 = vadd.f32 %v191, %v213
    %215 = vdwg.mxu0
    %216 = vmatpush.msra.mxu0 %v108
    %217 = vmatpush.msra.mxu0 %v107
    %218 = vmatpush.msra.mxu0 %v106
    %219 = vmatpush.msra.mxu0 %v105
    %220 = vmatpush.msra.mxu0 %v104
    %221 = vmatpush.msra.mxu0 %v103
    %222 = vmatpush.msra.mxu0 %v102
    %223 = vmatpush.msra.mxu0 %v101
    %224 = vmatpush.msra.mxu0 %v100
    %225 = vmatpush.msra.mxu0 %v99
    %226 = vmatpush.msra.mxu0 %v98
    %227 = vmatpush.msra.mxu0 %v97
    %228 = vmatpush.msra.mxu0 %v96
    %229 = vmatpush.msra.mxu0 %v95
    %230 = vmatpush.msra.mxu0 %v94
    %231 = vmatpush.msra.mxu0 %v93
    %232 = vmatmul.f32.gmra.mxu0 %v49
    %v233 = vpop.f32.mrf.mxu0
    %v234 = vadd.f32 %v211, %v233
    %235 = vmatmul.f32.gmra.mxu0 %v56
    %v236 = vpop.f32.mrf.mxu0
    %v237 = vadd.f32 %v214, %v236
    %238 = vdwg.mxu0
    %239 = vmatpush.msra.mxu0 %v124
    %240 = vmatpush.msra.mxu0 %v123
    %241 = vmatpush.msra.mxu0 %v122
    %242 = vmatpush.msra.mxu0 %v121
    %243 = vmatpush.msra.mxu0 %v120
    %244 = vmatpush.msra.mxu0 %v119
    %245 = vmatpush.msra.mxu0 %v118
    %246 = vmatpush.msra.mxu0 %v117
    %247 = vmatpush.msra.mxu0 %v116
    %248 = vmatpush.msra.mxu0 %v115
    %249 = vmatpush.msra.mxu0 %v114
    %250 = vmatpush.msra.mxu0 %v113
    %251 = vmatpush.msra.mxu0 %v112
    %252 = vmatpush.msra.mxu0 %v111
    %253 = vmatpush.msra.mxu0 %v110
    %254 = vmatpush.msra.mxu0 %v109
    %255 = vmatmul.f32.gmra.mxu0 %v50
    %v256 = vpop.f32.mrf.mxu0
    %v257 = vadd.f32 %v234, %v256
    %258 = vmatmul.f32.gmra.mxu0 %v57
    %v259 = vpop.f32.mrf.mxu0
    %v260 = vadd.f32 %v237, %v259
    %261 = vdwg.mxu0
    %262 = vmatpush.msra.mxu0 %v140
    %263 = vmatpush.msra.mxu0 %v139
    %264 = vmatpush.msra.mxu0 %v138
    %265 = vmatpush.msra.mxu0 %v137
    %266 = vmatpush.msra.mxu0 %v136
    %267 = vmatpush.msra.mxu0 %v135
    %268 = vmatpush.msra.mxu0 %v134
    %269 = vmatpush.msra.mxu0 %v133
    %270 = vmatpush.msra.mxu0 %v132
    %271 = vmatpush.msra.mxu0 %v131
    %272 = vmatpush.msra.mxu0 %v130
    %273 = vmatpush.msra.mxu0 %v129
    %274 = vmatpush.msra.mxu0 %v128
    %275 = vmatpush.msra.mxu0 %v127
    %276 = vmatpush.msra.mxu0 %v126
    %277 = vmatpush.msra.mxu0 %v125
    %278 = vmatmul.f32.gmra.mxu0 %v51
    %v279 = vpop.f32.mrf.mxu0
    %v280 = vadd.f32 %v257, %v279
    %281 = vmatmul.f32.gmra.mxu0 %v58
    %v282 = vpop.f32.mrf.mxu0
    %v283 = vadd.f32 %v260, %v282
    %284 = vdwg.mxu0
    %285 = vmatpush.msra.mxu0 %v156
    %286 = vmatpush.msra.mxu0 %v155
    %287 = vmatpush.msra.mxu0 %v154
    %288 = vmatpush.msra.mxu0 %v153
    %289 = vmatpush.msra.mxu0 %v152
    %290 = vmatpush.msra.mxu0 %v151
    %291 = vmatpush.msra.mxu0 %v150
    %292 = vmatpush.msra.mxu0 %v149
    %293 = vmatpush.msra.mxu0 %v148
    %294 = vmatpush.msra.mxu0 %v147
    %295 = vmatpush.msra.mxu0 %v146
    %296 = vmatpush.msra.mxu0 %v145
    %297 = vmatpush.msra.mxu0 %v144
    %298 = vmatpush.msra.mxu0 %v143
    %299 = vmatpush.msra.mxu0 %v142
    %300 = vmatpush.msra.mxu0 %v141
    %301 = vmatmul.f32.gmra.mxu0 %v52
    %v302 = vpop.f32.mrf.mxu0
    %v303 = vadd.f32 %v280, %v302
    %304 = vmatmul.f32.gmra.mxu0 %v59
    %v305 = vpop.f32.mrf.mxu0
    %v306 = vadd.f32 %v283, %v305
    %307 = vdwg.mxu0
    %308 = vmatpush.msra.mxu0 0.0
    %309 = vmatpush.msra.mxu0 0.0
    %310 = vmatpush.msra.mxu0 0.0
    %311 = vmatpush.msra.mxu0 0.0
    %312 = vmatpush.msra.mxu0 0.0
    %313 = vmatpush.msra.mxu0 0.0
    %314 = vmatpush.msra.mxu0 0.0
    %315 = vmatpush.msra.mxu0 0.0
    %316 = vmatpush.msra.mxu0 0.0
    %317 = vmatpush.msra.mxu0 0.0
    %318 = vmatpush.msra.mxu0 0.0
    %319 = vmatpush.msra.mxu0 0.0
    %320 = vmatpush.msra.mxu0 0.0
    %321 = vmatpush.msra.mxu0 0.0
    %322 = vmatpush.msra.mxu0 %v158
    %323 = vmatpush.msra.mxu0 %v157
    %324 = vmatmul.f32.gmra.mxu0 %v165
    %v325 = vpop.f32.mrf.mxu0
    %v326 = vadd.f32 %v303, %v325
    %327 = vmatmul.f32.gmra.mxu0 %v168
    %v328 = vpop.f32.mrf.mxu0
    %v329 = vadd.f32 %v306, %v328
    %330 = vdwg.mxu0
    %v331 = vmul.f32 %v326, 1.442695
    %v332 = vpow.pop %v331
    %v333 = vmul.f32 %v329, 1.442695
    %v334 = vpow.pop %v333
    %335 = vst [vmem:[#allocation7] sm:$0xff] %v332
    %336 = vst [vmem:[#allocation7 + $0x8] sm:$0xff] %v334
    // Predicated region
    $region22: #{tpu_custom_call.1} parent=1 // pred_check
      _
    $region23: #{tpu_custom_call.1} parent=1 // pred_check_branch
      %338 = sbr.rel (0) target = $region25
    $region24: #{tpu_custom_call.1} parent=1 // pred_region
      %340 = vsyncadd [#allocation4], 0
      %s341 = sshll.u32 [#allocation7], 4
      %s342 = int_to_ptr.vmem [resolvable:$true] %s341
      %s343 = sshll.u32 %s3, 4
      %s344 = int_to_ptr.hbm [resolvable:$true] %s343
      %349 = dma.vmem_to_hbm [thread:$0]  %s342, 256, %s344, [#allocation4], 128, 128, 8
    $region25: #{tpu_custom_call.1} parent=1 // pred_fallthru
      _
    // Predicated region
    $region26: #{tpu_custom_call.1} parent=1 // pred_check
      _
    $region27: #{tpu_custom_call.1} parent=1 // pred_check_branch
      %351 = sbr.rel (0) target = $region29
    $region28: #{tpu_custom_call.1} parent=1 // pred_region
      %353 = dma.done [#allocation4], 256
    $region29: #{tpu_custom_call.1} parent=1 // pred_fallthru
      _
    %354 = vsyncpa [#allocation3], 1
    %355 = vsyncpa [#allocation6], 1
    %356 = vsyncpa [#allocation4], 1

</llo_original>
